<compile_context>
chip_gen: v7x
topology: tpu7x:2x2x1
jax: 0.10.0
libtpu: 0.0.40
codegen_flags: <defaults>
</compile_context>

<pallas_src>
import functools

import jax
import jax.numpy as jnp
from jax.experimental import pallas as pl
from jax.experimental.pallas import tpu as pltpu

_VMEM_LIMIT_BYTES = 32 * 1024 * 1024      # safe on v5e / v6e / v7x
_FAST_PATH_F32_BYTES = 4 * 1024 * 1024    # single-block fast-path cutoff
_VAR_EPS = 1e-30                          # guards f32 cancellation in variance

# SMEM scalar slots (streaming path)
_MEAN, _HALF_INV_VAR = 0, 1


def _softplus(z):
    # Thresholded softplus == log(1 + exp(z)) without exp overflow.
    return jnp.maximum(z, 0.0) + jnp.log1p(jnp.exp(-jnp.abs(z)))


def _loss_from_weight_row(w_last, total_frames, softplus_w):
    # Only loop iteration i = T-1 of the PyTorch forward survives, NLL == 0:
    #   loss_i = (T-1) * sum_d( w^2 * log(w) );  loss = loss_i + softplus(...)
    loss_i = (total_frames - 1) * jnp.sum(w_last * w_last * jnp.log(w_last))
    return loss_i + _softplus(softplus_w * loss_i)


# ----------------------------------------------------------------------------
# Fast path: whole matrix resident in VMEM, single invocation (no grid).
# ----------------------------------------------------------------------------
def _tcl_fast_kernel(x_ref, o_ref, *, total_frames, feature_dim, softplus_w):
    x = x_ref[...].astype(jnp.float32)                   # (T, D)
    n = float(total_frames * feature_dim)
    mean = jnp.sum(x) / n
    d = x - mean
    var = jnp.sum(d * d) / (n - 1.0)                     # two-pass, unbiased
    var = jnp.maximum(var, _VAR_EPS)
    g = jnp.exp(-(d * d) * (0.5 / var))
    # Frame T-1's normalized weight row. (log(0) -> NaN kept for PyTorch
    # parity on degenerate inputs.)
    w_last = g[total_frames - 1:total_frames, :] / jnp.sum(g)
    o_ref[0, 0] = _loss_from_weight_row(w_last, total_frames, softplus_w)


# ----------------------------------------------------------------------------
# Streaming path: two-phase reduction over frame tiles (large T*D).
#   phase 0: sum(x), sum(x*x)  -> mean, unbiased variance
#   phase 1: sum(g) with g = exp(-0.5*(x-mean)^2/var); last tile emits loss.
# ----------------------------------------------------------------------------
def _tcl_stream_kernel(x_ref, o_ref, sum_acc, sq_acc, g_acc, stat_ref, *,
                       total_frames, feature_dim, tile_t, num_tiles,
                       softplus_w):
    phase = pl.program_id(0)
    t = pl.program_id(1)
    last_t = num_tiles - 1
    needs_mask = (total_frames % tile_t) != 0            # static Python bool

    x = x_ref[...].astype(jnp.float32)                   # (tile_t, D)

    def fold(v):
        # (tile_t, D) -> (8, D): pure elementwise VPU adds across vregs; the
        # cross-lane reduce + scalar store happen once, at the last tile.
        return jnp.sum(v.reshape(tile_t // 8, 8, feature_dim), axis=0)

    def row_mask(v):
        row = jax.lax.broadcasted_iota(jnp.int32, v.shape, 0) + t * tile_t
        return jnp.where(row < total_frames, v, 0.0)

    @pl.when(jnp.logical_and(phase == 0, t == 0))
    def _init():
        sum_acc[...] = jnp.zeros_like(sum_acc)
        sq_acc[...] = jnp.zeros_like(sq_acc)
        g_acc[...] = jnp.zeros_like(g_acc)

    @pl.when(phase == 0)
    def _stats():
        if needs_mask:
            # Pay the iota/compare/select mask only on the ragged last tile.
            @pl.when(t != last_t)
            def _full():
                sum_acc[...] += fold(x)
                sq_acc[...] += fold(x * x)

            @pl.when(t == last_t)
            def _ragged():
                xm = row_mask(x)
                sum_acc[...] += fold(xm)
                sq_acc[...] += fold(xm * xm)
        else:
            sum_acc[...] += fold(x)
            sq_acc[...] += fold(x * x)

        @pl.when(t == last_t)
        def _finalize_stats():
            n = float(total_frames * feature_dim)
            mean = jnp.sum(sum_acc[...]) / n
            # Single-pass unbiased variance (torch.std default); clamped so
            # f32 cancellation can never produce var <= 0.
            var = (jnp.sum(sq_acc[...]) - n * mean * mean) / (n - 1.0)
            var = jnp.maximum(var, _VAR_EPS)
            stat_ref[_MEAN] = mean
            stat_ref[_HALF_INV_VAR] = 0.5 / var

    @pl.when(phase == 1)
    def _weights():
        d = x - stat_ref[_MEAN]
        g = jnp.exp(-(d * d) * stat_ref[_HALF_INV_VAR])
        if needs_mask:
            @pl.when(t != last_t)
            def _full():
                g_acc[...] += fold(g)

            @pl.when(t == last_t)
            def _ragged():
                g_acc[...] += fold(row_mask(g))
        else:
            g_acc[...] += fold(g)

        @pl.when(t == last_t)
        def _emit():
            # Frame (total_frames - 1) lives in this tile at a static offset.
            last_local = (total_frames - 1) - last_t * tile_t
            w_last = g[last_local:last_local + 1, :] / jnp.sum(g_acc[...])
            o_ref[0, 0] = _loss_from_weight_row(
                w_last, total_frames, softplus_w)


def _pick_tile_t(total_frames, feature_dim, itemsize):
    """Largest frame tile (multiple of the dtype's sublane pack) whose VMEM
    footprint (2x double-buffered input + ~4 live f32 temporaries) stays
    around ~20 MiB, leaving headroom under the 32 MiB scoped limit."""
    sublane = {4: 8, 2: 16, 1: 32}.get(itemsize, 8)
    per_row = feature_dim * (2 * itemsize + 4 * 4)
    budget_rows = max(sublane, (20 * 1024 * 1024) // per_row)
    tile = min(total_frames, budget_rows)
    tile -= tile % sublane
    return max(sublane, tile)


def temporal_contrastive_loss(x, temperature=1.0, softplus_w=10000.0,
                              tile_t=None):
    # `temperature` only scales the cosine-similarity / NLL chain, which is
    # identically zero in the original forward, so it never reaches the kernel.
    del temperature
    T, D = x.shape
    softplus_w = float(softplus_w)

    if tile_t is None and T * D * 4 <= _FAST_PATH_F32_BYTES:
        # --- Single-block fast path: one HBM pass, zero grid-step overhead.
        kern = functools.partial(_tcl_fast_kernel, total_frames=T,
                                 feature_dim=D, softplus_w=softplus_w)
        out = pl.pallas_call(
            kern,
            out_shape=jax.ShapeDtypeStruct((1, 1), jnp.float32),
            in_specs=[pl.BlockSpec(memory_space=pltpu.MemorySpace.VMEM)],
            out_specs=pl.BlockSpec(memory_space=pltpu.MemorySpace.SMEM),
            compiler_params=pltpu.CompilerParams(
                vmem_limit_bytes=_VMEM_LIMIT_BYTES),
        )(x)
        return out[0, 0]

    # --- Streaming two-phase path.
    if tile_t is None:
        tile_t = _pick_tile_t(T, D, jnp.dtype(x.dtype).itemsize)
    tile_t = max(8, tile_t - tile_t % 8)       # fold() needs 8-row groups
    num_tiles = pl.cdiv(T, tile_t)

    kern = functools.partial(
        _tcl_stream_kernel, total_frames=T, feature_dim=D, tile_t=tile_t,
        num_tiles=num_tiles, softplus_w=softplus_w)

    out = pl.pallas_call(
        kern,
        out_shape=jax.ShapeDtypeStruct((1, 1), jnp.float32),
        grid_spec=pltpu.PrefetchScalarGridSpec(
            num_scalar_prefetch=0,
            grid=(2, num_tiles),                          # (phase, frame tile)
            in_specs=[pl.BlockSpec((tile_t, D), lambda p, t: (t, 0))],
            out_specs=pl.BlockSpec(memory_space=pltpu.MemorySpace.SMEM),
            scratch_shapes=[pltpu.VMEM((8, D), jnp.float32),   # sum(x)
                            pltpu.VMEM((8, D), jnp.float32),   # sum(x*x)
                            pltpu.VMEM((8, D), jnp.float32),   # sum(g)
                            pltpu.SMEM((2,), jnp.float32)]),   # mean, .5/var
        compiler_params=pltpu.CompilerParams(
            dimension_semantics=("arbitrary", "arbitrary"),
            vmem_limit_bytes=_VMEM_LIMIT_BYTES),
    )(x)   # no wrapper-side cast: kernel upcasts, bf16 DMAs half the bytes
    return out[0, 0]


# ----------------------------------------------------------------------------
# References (pure JAX) for verification
# ----------------------------------------------------------------------------
def reference_loss(x, temperature=1.0, softplus_w=10000.0):
    """Line-by-line port of the PyTorch forward (O(T^2) Python loop)."""
    x = jnp.asarray(x, jnp.float32)
    T, D = x.shape
    sigma = jnp.std(x, ddof=1)
    g = jnp.exp(-0.5 * (x - jnp.mean(x)) ** 2 / sigma ** 2)
    w = g / g.sum()
    loss = jnp.float32(0.0)
    for i in range(T):
        loss_i = jnp.zeros((D,), jnp.float32)
        for j in range(T):
            if j != i:
                dot = jnp.dot(x[i], x[j])
                denom = jnp.sqrt(jnp.maximum(
                    jnp.dot(x[i], x[i]) * jnp.dot(x[j], x[j]), 1e-8 ** 2))
                sim = dot / denom / temperature
                e = jnp.exp(sim)
                nll = -jnp.log(e / e)                 # == 0
                # F.kl_div(input, target, 'none') = target*(log(target)-input)
                loss_i = loss_i + w[i] * (jnp.log(w[i]) - nll)
        loss_i = jnp.sum(loss_i * w[i])
        loss = loss_i + jnp.log(1.0 + jnp.exp(softplus_w * loss_i))
    return loss


def reference_loss_closed_form(x, temperature=1.0, softplus_w=10000.0):
    """Closed form of what survives the PyTorch control flow (fast check)."""
    x = jnp.asarray(x, jnp.float32)
    T, D = x.shape
    sigma = jnp.std(x, ddof=1)
    g = jnp.exp(-0.5 * (x - jnp.mean(x)) ** 2 / sigma ** 2)
    w = g / g.sum()
    w_last = w[T - 1]
    loss_i = (T - 1) * jnp.sum(w_last * w_last * jnp.log(w_last))
    return loss_i + jnp.log(1.0 + jnp.exp(softplus_w * loss_i))


if __name__ == "__main__":
    key = jax.random.PRNGKey(0)

    # Module-native toy shape: total_frames=8, feature_dim=16 (fast path).
    T, D = 8, 16
    x = jax.random.normal(key, (T, D), dtype=jnp.float32)

    out = jax.block_until_ready(temporal_contrastive_loss(x))
    ref_loop = reference_loss(x)
    ref_cf = reference_loss_closed_form(x)
    assert jnp.allclose(ref_loop, ref_cf, rtol=1e-5, atol=1e-6), (ref_loop, ref_cf)
    assert jnp.isfinite(out), "kernel produced non-finite loss"
    assert jnp.allclose(out, ref_loop, rtol=1e-3, atol=1e-6), (out, ref_loop)

    # Streaming / two-phase path with a ragged (masked) last tile.
    T2, D2 = 44, 128
    x2 = jax.random.normal(jax.random.PRNGKey(1), (T2, D2), dtype=jnp.float32)
    out2 = jax.block_until_ready(temporal_contrastive_loss(x2, tile_t=16))
    ref2 = reference_loss_closed_form(x2)
    assert jnp.isfinite(out2), "kernel produced non-finite loss (tiled)"
    assert jnp.allclose(out2, ref2, rtol=1e-3, atol=1e-6), (out2, ref2)

    # Streaming path, exactly divisible tiles (no mask), bf16 input.
    T3, D3 = 64, 128
    x3 = jax.random.normal(jax.random.PRNGKey(2), (T3, D3),
                           dtype=jnp.float32).astype(jnp.bfloat16)
    out3 = jax.block_until_ready(temporal_contrastive_loss(x3, tile_t=16))
    ref3 = reference_loss_closed_form(x3)
    assert jnp.isfinite(out3), "kernel produced non-finite loss (bf16)"
    assert jnp.allclose(out3, ref3, rtol=5e-3, atol=1e-5), (out3, ref3)

    print("KERNEL_OK")
</pallas_src>

<mosaic_0001>
module attributes {stable_mosaic.version = 11 : i64} {
  func.func @_tcl_fast_kernel(%arg0: memref<8x16xf32, #tpu.memory_space<vmem>>, %arg1: memref<1x1xf32, #tpu.memory_space<smem>>) attributes {dimension_semantics = [], scalar_prefetch = 0 : i64, scratch_operands = 0 : i64, tpu.core_type = #tpu.core_type<tc>} {
    %c0 = arith.constant 0 : index
    %c0_0 = arith.constant 0 : index
    %0 = vector.load %arg0[%c0, %c0_0] : memref<8x16xf32, #tpu.memory_space<vmem>>, vector<8x16xf32>
    %1 = vector.shape_cast %0 : vector<8x16xf32> to vector<1x8x16xf32>
    %cst = arith.constant dense<0.000000e+00> : vector<1xf32>
    %2 = vector.multi_reduction <add>, %1, %cst [1, 2] : vector<1x8x16xf32> to vector<1xf32>
    %3 = vector.shape_cast %2 : vector<1xf32> to vector<1x1x1xf32>
    %4 = vector.extract %3[0, 0, 0] : f32 from vector<1x1x1xf32>
    %cst_1 = arith.constant 1.280000e+02 : f32
    %5 = arith.divf %4, %cst_1 : f32
    %6 = vector.broadcast %5 : f32 to vector<8x16xf32>
    %7 = arith.subf %0, %6 : vector<8x16xf32>
    %8 = arith.mulf %7, %7 : vector<8x16xf32>
    %9 = vector.shape_cast %8 : vector<8x16xf32> to vector<1x8x16xf32>
    %cst_2 = arith.constant dense<0.000000e+00> : vector<1xf32>
    %10 = vector.multi_reduction <add>, %9, %cst_2 [1, 2] : vector<1x8x16xf32> to vector<1xf32>
    %11 = vector.shape_cast %10 : vector<1xf32> to vector<1x1x1xf32>
    %12 = vector.extract %11[0, 0, 0] : f32 from vector<1x1x1xf32>
    %cst_3 = arith.constant 1.270000e+02 : f32
    %13 = arith.divf %12, %cst_3 : f32
    %cst_4 = arith.constant 1.000000e-30 : f32
    %14 = arith.maximumf %13, %cst_4 : f32
    %15 = arith.mulf %7, %7 : vector<8x16xf32>
    %cst_5 = arith.constant 0.000000e+00 : f32
    %16 = vector.broadcast %cst_5 : f32 to vector<8x16xf32>
    %17 = arith.subf %16, %15 : vector<8x16xf32>
    %cst_6 = arith.constant 5.000000e-01 : f32
    %18 = arith.divf %cst_6, %14 : f32
    %19 = vector.broadcast %18 : f32 to vector<8x16xf32>
    %20 = arith.mulf %17, %19 : vector<8x16xf32>
    %21 = math.exp %20 : vector<8x16xf32>
    %22 = vector.extract_strided_slice %21 {offsets = [7, 0], sizes = [1, 16], strides = [1, 1]} : vector<8x16xf32> to vector<1x16xf32>
    %23 = vector.shape_cast %21 : vector<8x16xf32> to vector<1x8x16xf32>
    %cst_7 = arith.constant dense<0.000000e+00> : vector<1xf32>
    %24 = vector.multi_reduction <add>, %23, %cst_7 [1, 2] : vector<1x8x16xf32> to vector<1xf32>
    %25 = vector.shape_cast %24 : vector<1xf32> to vector<1x1x1xf32>
    %26 = vector.extract %25[0, 0, 0] : f32 from vector<1x1x1xf32>
    %27 = vector.broadcast %26 : f32 to vector<1x16xf32>
    %28 = arith.divf %22, %27 : vector<1x16xf32>
    %29 = arith.mulf %28, %28 : vector<1x16xf32>
    %30 = math.log %28 : vector<1x16xf32>
    %31 = arith.mulf %29, %30 : vector<1x16xf32>
    %32 = vector.shape_cast %31 : vector<1x16xf32> to vector<1x1x16xf32>
    %cst_8 = arith.constant dense<0.000000e+00> : vector<1xf32>
    %33 = vector.multi_reduction <add>, %32, %cst_8 [1, 2] : vector<1x1x16xf32> to vector<1xf32>
    %34 = vector.shape_cast %33 : vector<1xf32> to vector<1x1x1xf32>
    %35 = vector.extract %34[0, 0, 0] : f32 from vector<1x1x1xf32>
    %cst_9 = arith.constant 7.000000e+00 : f32
    %36 = arith.mulf %cst_9, %35 : f32
    %cst_10 = arith.constant 1.000000e+04 : f32
    %37 = arith.mulf %cst_10, %36 : f32
    %cst_11 = arith.constant 0.000000e+00 : f32
    %38 = arith.maximumf %37, %cst_11 : f32
    %39 = math.absf %37 : f32
    %cst_12 = arith.constant 0.000000e+00 : f32
    %40 = arith.subf %cst_12, %39 : f32
    %41 = math.exp %40 : f32
    %42 = math.log1p %41 : f32
    %43 = arith.addf %38, %42 : f32
    %44 = arith.addf %36, %43 : f32
    %c0_13 = arith.constant 0 : index
    %c0_14 = arith.constant 0 : index
    %45 = memref.load %arg1[%c0_13, %c0_14] : memref<1x1xf32, #tpu.memory_space<smem>>
    memref.store %44, %arg1[%c0_13, %c0_14] : memref<1x1xf32, #tpu.memory_space<smem>>
    return
  }
}

</mosaic_0001>

<llo_original>
// kernel: tpu_custom_call.1
$region0: #{tpu_custom_call.1}
  #allocation0 [shape = 'u32[]', space=smem, size = 0x4, offset = 0x4, fixed_abs, tag = 'smem constant byte address 0x4 - core index']
  #allocation1 [shape = 'u32[144,128]{1,0:T(1,128)}', space=vmem, size = 0x12000, scoped, tag = 'internal scratch']
  %s0 = inlined_call_operand.hbm [shape: f32[8,16], index: 0, kind: input, shape index: {}]
  %s1 = inlined_call_operand.hbm [shape: f32[1,1], index: 1, kind: output, shape index: {}]
  %s2 = sld [smem:[#allocation0]]
  $region18: #{tpu_custom_call.1} parent=0
    _
  %s4 = ssub.s32 1, %s2
  %s5 = scalar_select 0, %s4, %s2
  $region1: #{tpu_custom_call.1} parent=0
    #allocation2 [shape = 'u8[4096]{0}', space=vmem, size = 0x1000, scoped, tag = 'input window, operand 0, single buffered']
    #allocation3 [shape = 's32[1]{0}', space=sflag, size = 0x4, scoped, tag = 'scoped memory for tpu_custom_call.1']
    #allocation4 [shape = 's32[1]{0}', space=sflag, size = 0x4, scoped, tag = 'scoped memory for tpu_custom_call.1']
    #allocation5 [shape = 'u8[512]{0}', space=smem, size = 0x200, scoped, tag = 'output window, operand 0, single buffered']
    %6 = vsyncpa [#allocation3], 0
    %7 = vsyncpa [#allocation4], 0
    // Predicated region
    $region2: #{tpu_custom_call.1} parent=1 // pred_check
      _
    $region3: #{tpu_custom_call.1} parent=1 // pred_check_branch
      %9 = sbr.rel (0) target = $region5
    $region4: #{tpu_custom_call.1} parent=1 // pred_region
      %s11 = ssub.s32 128, 128
      %12 = vsyncadd [#allocation3], %s11
      %s14 = sshll.u32 [#allocation2], 4
      %s15 = int_to_ptr.vmem [resolvable:$true] %s14
      %17 = dma.hbm_to_vmem [thread:$0]  %s0, 128, %s15, [#allocation3]
    $region5: #{tpu_custom_call.1} parent=1 // pred_fallthru
      _
    // Predicated region
    $region6: #{tpu_custom_call.1} parent=1 // pred_check
      _
    $region7: #{tpu_custom_call.1} parent=1 // pred_check_branch
      %19 = sbr.rel (0) target = $region9
    $region8: #{tpu_custom_call.1} parent=1 // pred_region
      %20 = dma.done [#allocation3], 128
    $region9: #{tpu_custom_call.1} parent=1 // pred_fallthru
      _
    %v21 = vld [vmem:[#allocation2] sm:$0xff]
    %vm22 = vcmask 130048
    %v23 = vsel %vm22, %v21, 0.0
    %24 = vadd.xlane.f32.xlu0 %v23
    %v25 = vpop.xlane.xlu0 %24
    %v26 = vrot.slane %v25, 4
    %v27 = vadd.f32 %v25, %v26
    %v28 = vrot.slane %v27, 2
    %v29 = vadd.f32 %v27, %v28
    %v30 = vrot.slane %v29, 1
    %v31 = vadd.f32 %v29, %v30
    %s32 = vtos %v31
    %v33 = vrcp.pop 128.0
    %s34 = vtos %v33
    %s35 = smul.f32 %s32, %s34
    %v36 = vstv %s35
    %v37 = vsub.f32 %v21, %v36
    %v38 = vmul.f32 %v37, %v37
    %v39 = vsel %vm22, %v38, 0.0
    %40 = vadd.xlane.f32.xlu0 %v39
    %v41 = vpop.xlane.xlu0 %40
    %v42 = vrot.slane %v41, 4
    %v43 = vadd.f32 %v41, %v42
    %v44 = vrot.slane %v43, 2
    %v45 = vadd.f32 %v43, %v44
    %v46 = vrot.slane %v45, 1
    %v47 = vadd.f32 %v45, %v46
    %s48 = vtos %v47
    %v49 = vrcp.pop 127.0
    %s50 = vtos %v49
    %s51 = smul.f32 %s48, %s50
    %s52 = smax.f32 %s51, 1e-30
    %v53 = vsub.f32 0.0, %v38
    %v54 = vstv %s52
    %v55 = vrcp.pop %v54
    %s56 = vtos %v55
    %s57 = smul.f32 0.5, %s56
    %v58 = vstv %s57
    %v59 = vmul.f32 %v53, %v58
    %v60 = vmul.f32 %v59, 1.442695
    %v61 = vpow.pop %v60
    %v62 = vsel %vm22, %v61, 0.0
    %63 = vadd.xlane.f32.xlu0 %v62
    %v64 = vpop.xlane.xlu0 %63
    %v65 = vrot.slane %v64, 4
    %v66 = vadd.f32 %v64, %v65
    %v67 = vrot.slane %v66, 2
    %v68 = vadd.f32 %v66, %v67
    %v69 = vrot.slane %v68, 1
    %v70 = vadd.f32 %v68, %v69
    %s71 = vtos %v70
    %v72 = vstv %s71
    %v73 = vrcp.pop %v72
    %v74 = vmul.f32 %v61, %v73
    %v75 = vmul.f32 %v74, %v74
    %v76 = vlog2.pop %v74
    %v77 = vmul.f32 %v76, 0.6931472
    %v78 = vmul.f32 %v75, %v77
    %v80 = vrot.slane %v78, 7
    %vm82 = vcmask 122880
    %v83 = vsel %vm82, %v80, 0.0
    %84 = vadd.xlane.f32.xlu0 %v83
    %v85 = vpop.xlane.xlu0 %84
    %v86 = vrot.slane %v85, 4
    %v87 = vadd.f32 %v85, %v86
    %v88 = vrot.slane %v87, 2
    %v89 = vadd.f32 %v87, %v88
    %v90 = vrot.slane %v89, 1
    %v91 = vadd.f32 %v89, %v90
    %s92 = vtos %v91
    %s93 = smul.f32 %s92, 7.0
    %s94 = smul.f32 %s93, 10000.0
    %s95 = smax.f32 %s94, 0.0
    %s96 = sand.u32 2147483647, %s94
    %s97 = ssub.f32 0.0, %s96
    %v98 = vstv %s97
    %v99 = vmul.f32 %v98, 1.442695
    %v100 = vpow.pop %v99
    %s101 = vtos %v100
    %v102 = vstv %s101
    %v103 = vadd.f32 %v102, 1.0
    %v104 = vlog2.pop %v103
    %v105 = vmul.f32 %v104, 0.6931472
    %v106 = vmul.f32 -0.5, %v102
    %v107 = vadd.f32 %v106, 1.0
    %v108 = vmul.f32 %v107, %v102
    %v109 = vand.u32 2147483647, %v102
    %vm110 = vcmp.lt.f32.partialorder %v109, 0.0004427343
    %v111 = vsel %vm110, %v108, %v105
    %s112 = vtos %v111
    %s113 = sadd.f32 %s95, %s112
    %s114 = sadd.f32 %s93, %s113
    %s115 = scalar_lea.smem [#allocation5], 0
    %116 = sst [smem:[%s115]] %s114
    // Predicated region
    $region10: #{tpu_custom_call.1} parent=1 // pred_check
      _
    $region11: #{tpu_custom_call.1} parent=1 // pred_check_branch
      %118 = sbr.rel (0) target = $region13
    $region12: #{tpu_custom_call.1} parent=1 // pred_region
      %s120 = ssub.s32 16, 16
      %121 = vsyncadd [#allocation4], %s120
      %124 = dma.smem_to_hbm [#allocation5], 16, %s1, [#allocation4]
    $region13: #{tpu_custom_call.1} parent=1 // pred_fallthru
      _
    // Predicated region
    $region14: #{tpu_custom_call.1} parent=1 // pred_check
      _
    $region15: #{tpu_custom_call.1} parent=1 // pred_check_branch
      %126 = sbr.rel (0) target = $region17
    $region16: #{tpu_custom_call.1} parent=1 // pred_region
      %127 = dma.done [#allocation4], 16
    $region17: #{tpu_custom_call.1} parent=1 // pred_fallthru
      _
    %128 = sfence
    %129 = vsyncpa [#allocation3], 1
    %130 = vsyncpa [#allocation4], 1

</llo_original>
